<compile_context>
chip_gen: v5e
topology: v5e:2x2
jax: 0.10.0
libtpu: 0.0.40
codegen_flags: <defaults>
</compile_context>

<pallas_src>
import functools

import jax
import jax.numpy as jnp
from jax.experimental import pallas as pl
from jax.experimental.pallas import tpu as pltpu


def _round_up(x: int, m: int) -> int:
    return ((x + m - 1) // m) * m


def _pred_kernel(h_ref, w_ref, b_ref, v_ref, p_ref, *, act_dim: int):
    # h: [TB, H] bf16, w: [H, PAD] bf16, b: [1, PAD] f32
    # v: [TB, 1] f32, p: [TB, act_dim] f32
    fused = jnp.dot(h_ref[...], w_ref[...],
                    preferred_element_type=jnp.float32)      # MXU, f32 acc
    fused = fused + b_ref[...]            # lanes 0..A-1 = logits, lane A = v

    lane = jax.lax.broadcasted_iota(jnp.int32, fused.shape, 1)
    is_policy = lane < act_dim

    # Numerically stable log_softmax over the policy lanes only (value lane
    # and zero-padded lanes masked to a huge negative -> exp() underflows to 0).
    masked = jnp.where(is_policy, fused, jnp.float32(-1e30))
    m = jnp.max(masked, axis=-1, keepdims=True)
    lse = jnp.log(jnp.sum(jnp.exp(masked - m), axis=-1, keepdims=True))
    logp = fused - (m + lse)

    # Slice in-register; store only the useful lanes (masked narrow vst, but
    # the kernel is HBM-bound so fewer bytes win).
    v_ref[...] = fused[:, act_dim:act_dim + 1]
    p_ref[...] = logp[:, :act_dim]


def make_pred_params(wv, bv, wp, bp):
    """Pack PyTorch-layout Linear params ([out,in], [out]) into a fused,
    lane-dense [H, PAD] bf16 weight slab + [1, PAD] f32 bias row.  Lanes
    0..A-1 hold the policy head, lane A holds the value head.  Call ONCE when
    the weights are created/loaded (hoisted out of the per-step hot path)."""
    H = wv.shape[1]
    A = wp.shape[0]
    pad = _round_up(A + 1, 128)                    # lane-dense MXU width
    w_cat = jnp.zeros((H, pad), jnp.float32)
    w_cat = w_cat.at[:, 0:A].set(wp.T.astype(jnp.float32))
    w_cat = w_cat.at[:, A:A + 1].set(wv.T.astype(jnp.float32))
    b_cat = jnp.zeros((1, pad), jnp.float32)
    b_cat = b_cat.at[0, 0:A].set(bp.astype(jnp.float32))
    b_cat = b_cat.at[0, A].set(bv.astype(jnp.float32)[0])
    return w_cat.astype(jnp.bfloat16), b_cat, A


@functools.partial(jax.jit, static_argnames=("act_dim",))
def pred_forward_fused(h, w_cat, b_cat, *, act_dim):
    """h: [B, H]; w_cat: [H, PAD] bf16; b_cat: [1, PAD] f32 (make_pred_params).
    Returns (v [B,1] f32, log_probs [B,act_dim] f32)."""
    B, H = h.shape
    PAD = w_cat.shape[1]

    # Sublane-aligned batch tile.  512 rows ~= 85% of HBM roofline; batches
    # >512 give >=2 "parallel" blocks (keeps both v7x TensorCores busy).
    # NOTE(synk): if H ever grows to multi-K, keep TB <= 512 or raise
    # vmem_limit_bytes via CompilerParams.
    TB = min(512, _round_up(B, 8))
    grid = (pl.cdiv(B, TB),)          # ragged last block handled by Pallas

    h_bf = h.astype(jnp.bfloat16)     # MXU-native stream; f32 accumulation

    cost = pl.CostEstimate(
        flops=2 * B * H * PAD,
        transcendentals=B * PAD,
        bytes_accessed=2 * B * H + 2 * H * PAD + 4 * PAD
        + 4 * B * (1 + act_dim),
    )

    v, log_probs = pl.pallas_call(
        functools.partial(_pred_kernel, act_dim=act_dim),
        out_shape=(
            jax.ShapeDtypeStruct((B, 1), jnp.float32),
            jax.ShapeDtypeStruct((B, act_dim), jnp.float32),
        ),
        grid=grid,
        in_specs=[
            pl.BlockSpec((TB, H), lambda i: (i, 0)),    # h rows streamed
            pl.BlockSpec((H, PAD), lambda i: (0, 0)),   # fused weight slab
            pl.BlockSpec((1, PAD), lambda i: (0, 0)),   # fused bias row
        ],
        out_specs=(
            pl.BlockSpec((TB, 1), lambda i: (i, 0)),
            pl.BlockSpec((TB, act_dim), lambda i: (i, 0)),
        ),
        compiler_params=pltpu.CompilerParams(
            dimension_semantics=("parallel",)),
        cost_estimate=cost,
    )(h_bf, w_cat, b_cat)

    return v, log_probs


def pred_reference(h, wv, bv, wp, bp):
    """Plain-JAX f32 reference mirroring the PyTorch forward."""
    v = h @ wv.T + bv
    logits = h @ wp.T + bp
    return v, jax.nn.log_softmax(logits, axis=-1)


if __name__ == "__main__":
    HIDDEN = 128          # CFG.hidden
    ACT_DIM = 4           # small action dim
    BATCH = 8

    key = jax.random.PRNGKey(0)
    k_h, k_wv, k_bv, k_wp, k_bp = jax.random.split(key, 5)

    # Deterministic synthetic parameters (PyTorch Linear shapes: [out, in], [out]).
    bound = 1.0 / (HIDDEN ** 0.5)
    h = jax.random.normal(k_h, (BATCH, HIDDEN), dtype=jnp.float32)
    wv = jax.random.uniform(k_wv, (1, HIDDEN), minval=-bound, maxval=bound, dtype=jnp.float32)
    bv = jax.random.uniform(k_bv, (1,), minval=-bound, maxval=bound, dtype=jnp.float32)
    wp = jax.random.uniform(k_wp, (ACT_DIM, HIDDEN), minval=-bound, maxval=bound, dtype=jnp.float32)
    bp = jax.random.uniform(k_bp, (ACT_DIM,), minval=-bound, maxval=bound, dtype=jnp.float32)

    # One-time weight packing (hoisted out of the hot path).
    w_cat, b_cat, A = make_pred_params(wv, bv, wp, bp)

    v_out, logp_out = pred_forward_fused(h, w_cat, b_cat, act_dim=A)
    jax.block_until_ready((v_out, logp_out))

    v_ref, logp_ref = pred_reference(h, wv, bv, wp, bp)
    assert v_out.shape == (BATCH, 1) and logp_out.shape == (BATCH, ACT_DIM)
    # bf16 matmul inputs with f32 accumulation -> small absolute error vs f32 ref.
    assert jnp.allclose(v_out, v_ref, atol=2e-2, rtol=2e-2), "value head mismatch"
    assert jnp.allclose(logp_out, logp_ref, atol=2e-2, rtol=2e-2), "log_softmax head mismatch"

    # Also exercise a larger, non-tile-aligned batch (multi-block grid + ragged
    # last block, no padding copies).
    h_big = jax.random.normal(jax.random.PRNGKey(1), (777, HIDDEN), dtype=jnp.float32)
    v_big, logp_big = pred_forward_fused(h_big, w_cat, b_cat, act_dim=A)
    jax.block_until_ready((v_big, logp_big))
    v_big_ref, logp_big_ref = pred_reference(h_big, wv, bv, wp, bp)
    assert v_big.shape == (777, 1) and logp_big.shape == (777, ACT_DIM)
    assert jnp.allclose(v_big, v_big_ref, atol=2e-2, rtol=2e-2), "value head mismatch (big batch)"
    assert jnp.allclose(logp_big, logp_big_ref, atol=2e-2, rtol=2e-2), "log_softmax mismatch (big batch)"

    print("KERNEL_OK")
</pallas_src>

<mosaic_0001>
module attributes {stable_mosaic.version = 11 : i64} {
  func.func @_pred_kernel(%arg0: i32, %arg1: memref<8x128xbf16, #tpu.memory_space<vmem>>, %arg2: memref<128x128xbf16, #tpu.memory_space<vmem>>, %arg3: memref<1x128xf32, #tpu.memory_space<vmem>>, %arg4: memref<8x1xf32, #tpu.memory_space<vmem>>, %arg5: memref<8x4xf32, #tpu.memory_space<vmem>>) attributes {dimension_semantics = [#tpu.dimension_semantics<parallel>], iteration_bounds = array<i64: 1>, scalar_prefetch = 0 : i64, scratch_operands = 0 : i64, tpu.core_type = #tpu.core_type<tc>, window_params = [{transform_indices = @transform_0, window_bounds = array<i64: 8, 128>}, {pipeline_mode = #tpu.pipeline_mode<synchronous>, transform_indices = @transform_1, window_bounds = array<i64: 128, 128>}, {pipeline_mode = #tpu.pipeline_mode<synchronous>, transform_indices = @transform_2, window_bounds = array<i64: 1, 128>}, {transform_indices = @transform_3, window_bounds = array<i64: 8, 1>}, {transform_indices = @transform_4, window_bounds = array<i64: 8, 4>}]} {
    %c0 = arith.constant 0 : index
    %c0_0 = arith.constant 0 : index
    %0 = vector.load %arg1[%c0, %c0_0] : memref<8x128xbf16, #tpu.memory_space<vmem>>, vector<8x128xbf16>
    %c0_1 = arith.constant 0 : index
    %c0_2 = arith.constant 0 : index
    %1 = vector.load %arg2[%c0_1, %c0_2] : memref<128x128xbf16, #tpu.memory_space<vmem>>, vector<128x128xbf16>
    %cst = arith.constant dense<0.000000e+00> : vector<8x128xf32>
    %2 = tpu.matmul %0, %1, %cst {dimension_numbers = #tpu.dot_dimension_numbers<[1], [0], [0], [1], [0, 0, 1, 1], [], []>} : vector<8x128xbf16>, vector<128x128xbf16>, vector<8x128xf32> -> vector<8x128xf32>
    %c0_3 = arith.constant 0 : index
    %c0_4 = arith.constant 0 : index
    %3 = vector.load %arg3[%c0_3, %c0_4] : memref<1x128xf32, #tpu.memory_space<vmem>>, vector<1x128xf32>
    %4 = vector.broadcast %3 : vector<1x128xf32> to vector<8x128xf32>
    %5 = arith.addf %2, %4 : vector<8x128xf32>
    %6 = tpu.iota {dimensions = array<i32: 1>} : vector<8x128xi32>
    %c4_i32 = arith.constant 4 : i32
    %7 = vector.broadcast %c4_i32 : i32 to vector<8x128xi32>
    %8 = arith.cmpi slt, %6, %7 : vector<8x128xi32>
    %cst_5 = arith.constant -1.000000e+30 : f32
    %9 = vector.broadcast %cst_5 : f32 to vector<8x128xf32>
    %10 = arith.select %8, %5, %9 : vector<8x128xi1>, vector<8x128xf32>
    %cst_6 = arith.constant dense<0xFF800000> : vector<8xf32>
    %11 = vector.multi_reduction <maximumf>, %10, %cst_6 [1] : vector<8x128xf32> to vector<8xf32>
    %12 = vector.shape_cast %11 : vector<8xf32> to vector<8x1xf32>
    %13 = vector.broadcast %12 : vector<8x1xf32> to vector<8x128xf32>
    %14 = arith.subf %10, %13 : vector<8x128xf32>
    %15 = math.exp %14 : vector<8x128xf32>
    %cst_7 = arith.constant dense<0.000000e+00> : vector<8xf32>
    %16 = vector.multi_reduction <add>, %15, %cst_7 [1] : vector<8x128xf32> to vector<8xf32>
    %17 = vector.shape_cast %16 : vector<8xf32> to vector<8x1xf32>
    %18 = math.log %17 : vector<8x1xf32>
    %19 = arith.addf %12, %18 : vector<8x1xf32>
    %20 = vector.broadcast %19 : vector<8x1xf32> to vector<8x128xf32>
    %21 = arith.subf %5, %20 : vector<8x128xf32>
    %22 = vector.extract_strided_slice %5 {offsets = [0, 4], sizes = [8, 1], strides = [1, 1]} : vector<8x128xf32> to vector<8x1xf32>
    %c0_8 = arith.constant 0 : index
    %c0_9 = arith.constant 0 : index
    %23 = vector.load %arg4[%c0_8, %c0_9] : memref<8x1xf32, #tpu.memory_space<vmem>>, vector<8x1xf32>
    tpu.vector_store %arg4[%c0_8, %c0_9], %22 {strides = array<i32>} : memref<8x1xf32, #tpu.memory_space<vmem>>, vector<8x1xf32>,
    %24 = vector.extract_strided_slice %21 {offsets = [0, 0], sizes = [8, 4], strides = [1, 1]} : vector<8x128xf32> to vector<8x4xf32>
    %c0_10 = arith.constant 0 : index
    %c0_11 = arith.constant 0 : index
    %25 = vector.load %arg5[%c0_10, %c0_11] : memref<8x4xf32, #tpu.memory_space<vmem>>, vector<8x4xf32>
    tpu.vector_store %arg5[%c0_10, %c0_11], %24 {strides = array<i32>} : memref<8x4xf32, #tpu.memory_space<vmem>>, vector<8x4xf32>,
    return
  }
  func.func @transform_0(%arg0: i32) -> (i32, i32) {
    %c0_i32 = arith.constant 0 : i32
    %c0_i32_0 = arith.constant 0 : i32
    return %arg0, %c0_i32 : i32, i32
  }
  func.func @transform_1(%arg0: i32) -> (i32, i32) {
    %c0_i32 = arith.constant 0 : i32
    %c0_i32_0 = arith.constant 0 : i32
    %c0_i32_1 = arith.constant 0 : i32
    return %c0_i32, %c0_i32_0 : i32, i32
  }
  func.func @transform_2(%arg0: i32) -> (i32, i32) {
    %c0_i32 = arith.constant 0 : i32
    %c0_i32_0 = arith.constant 0 : i32
    %c0_i32_1 = arith.constant 0 : i32
    return %c0_i32, %c0_i32_0 : i32, i32
  }
  func.func @transform_3(%arg0: i32) -> (i32, i32) {
    %c0_i32 = arith.constant 0 : i32
    %c0_i32_0 = arith.constant 0 : i32
    return %arg0, %c0_i32 : i32, i32
  }
  func.func @transform_4(%arg0: i32) -> (i32, i32) {
    %c0_i32 = arith.constant 0 : i32
    %c0_i32_0 = arith.constant 0 : i32
    return %arg0, %c0_i32 : i32, i32
  }
}

</mosaic_0001>

<llo_original>
// kernel: pred_forward_fused.1
$region0: #{pred_forward_fused.1}
  #allocation0 [shape = 'u32[]', space=smem, size = 0x4, offset = 0x4, fixed_abs, tag = 'smem constant byte address 0x4 - core index']
  #allocation1 [shape = 'u32[72,128]{1,0:T(1,128)}', space=vmem, size = 0x9000, scoped, tag = 'internal scratch']
  %s0 = inlined_call_operand.vmem [shape: bf16[8,128], index: 0, kind: input, shape index: {}]
  %s1 = inlined_call_operand.hbm [shape: bf16[128,128], index: 1, kind: input, shape index: {}]
  %s2 = inlined_call_operand.vmem [shape: f32[1,128], index: 2, kind: input, shape index: {}]
  %s3 = inlined_call_operand.vmem [shape: f32[8,1], index: 3, kind: output, shape index: {0}]
  %s4 = inlined_call_operand.vmem [shape: f32[8,4], index: 4, kind: output, shape index: {1}]
  %5 = xla_tuple %s3, %s4
  %s6 = sld [smem:[#allocation0]]
  $region34: #{pred_forward_fused.1} parent=0
    _
  %s8 = ssub.s32 1, %s6
  %s9 = scalar_select 0, %s8, %s6
  $region1: #{pred_forward_fused.1} parent=0
    #allocation2 [shape = 'u8[32768]{0}', space=vmem, size = 0x8000, scoped, tag = 'input window, operand 1, single buffered']
    #allocation3 [shape = 's32[1]{0}', space=sflag, size = 0x4, scoped, tag = 'scoped memory for pred_forward_fused.1']
    %10 = vsyncpa [#allocation3], 0
    // Predicated region
    $region2: #{pred_forward_fused.1} parent=1 // pred_check
      _
    $region3: #{pred_forward_fused.1} parent=1 // pred_check_branch
      %12 = sbr.rel (0) target = $region5
    $region4: #{pred_forward_fused.1} parent=1 // pred_region
      _
    $region5: #{pred_forward_fused.1} parent=1 // pred_fallthru
      _
    // Predicated region
    $region6: #{pred_forward_fused.1} parent=1 // pred_check
      _
    $region7: #{pred_forward_fused.1} parent=1 // pred_check_branch
      %14 = sbr.rel (0) target = $region9
    $region8: #{pred_forward_fused.1} parent=1 // pred_region
      %16 = vsyncadd [#allocation3], 0
      %s17 = sshll.u32 %s1, 4
      %s18 = int_to_ptr.hbm [resolvable:$true] %s17
      %s19 = sshll.u32 [#allocation2], 4
      %s20 = int_to_ptr.vmem [resolvable:$true] %s19
      %25 = dma.hbm_to_vmem [thread:$0]  %s18, 1024, %s20, [#allocation3], 64, 64, 4
    $region9: #{pred_forward_fused.1} parent=1 // pred_fallthru
      _
    // Predicated region
    $region10: #{pred_forward_fused.1} parent=1 // pred_check
      _
    $region11: #{pred_forward_fused.1} parent=1 // pred_check_branch
      %27 = sbr.rel (0) target = $region13
    $region12: #{pred_forward_fused.1} parent=1 // pred_region
      _
    $region13: #{pred_forward_fused.1} parent=1 // pred_fallthru
      _
    // Predicated region
    $region14: #{pred_forward_fused.1} parent=1 // pred_check
      _
    $region15: #{pred_forward_fused.1} parent=1 // pred_check_branch
      %29 = sbr.rel (0) target = $region17
    $region16: #{pred_forward_fused.1} parent=1 // pred_region
      %31 = dma.done [#allocation3], 1024
    $region17: #{pred_forward_fused.1} parent=1 // pred_fallthru
      _
    %v32 = vld [vmem:[%s0] sm:$0xf]
    %v33 = vld [vmem:[#allocation2] sm:$0xf]
    %v34 = vld [vmem:[#allocation2 + $0x4] sm:$0xf]
    %v35 = vld [vmem:[#allocation2 + $0x8] sm:$0xf]
    %v36 = vld [vmem:[#allocation2 + $0xc] sm:$0xf]
    %v37 = vld [vmem:[#allocation2 + $0x10] sm:$0xf]
    %v38 = vld [vmem:[#allocation2 + $0x14] sm:$0xf]
    %v39 = vld [vmem:[#allocation2 + $0x18] sm:$0xf]
    %v40 = vld [vmem:[#allocation2 + $0x1c] sm:$0xf]
    %v41 = vld [vmem:[#allocation2 + $0x20] sm:$0xf]
    %v42 = vld [vmem:[#allocation2 + $0x24] sm:$0xf]
    %v43 = vld [vmem:[#allocation2 + $0x28] sm:$0xf]
    %v44 = vld [vmem:[#allocation2 + $0x2c] sm:$0xf]
    %v45 = vld [vmem:[#allocation2 + $0x30] sm:$0xf]
    %v46 = vld [vmem:[#allocation2 + $0x34] sm:$0xf]
    %v47 = vld [vmem:[#allocation2 + $0x38] sm:$0xf]
    %v48 = vld [vmem:[#allocation2 + $0x3c] sm:$0xf]
    %v49 = vld [vmem:[%s2] sm:$0x1]
    %v51 = vperm.slane %v49, 0
    %v69 = vunpack.c.l.b16 %v33
    %v70 = vunpack.c.l.b16 %v34
    %v71 = vunpack.c.l.b16 %v35
    %v72 = vunpack.c.l.b16 %v36
    %v73 = vunpack.c.l.b16 %v37
    %v74 = vunpack.c.l.b16 %v38
    %v75 = vunpack.c.l.b16 %v39
    %v76 = vunpack.c.l.b16 %v40
    %v77 = vunpack.c.l.b16 %v41
    %v78 = vunpack.c.l.b16 %v42
    %v79 = vunpack.c.l.b16 %v43
    %v80 = vunpack.c.l.b16 %v44
    %v81 = vunpack.c.l.b16 %v45
    %v82 = vunpack.c.l.b16 %v46
    %v83 = vunpack.c.l.b16 %v47
    %v84 = vunpack.c.l.b16 %v48
    %v85 = vpack.c.b16 %v70, %v69
    %v86 = vpack.c.b16 %v72, %v71
    %v87 = vpack.c.b16 %v74, %v73
    %v88 = vpack.c.b16 %v76, %v75
    %v89 = vpack.c.b16 %v78, %v77
    %v90 = vpack.c.b16 %v80, %v79
    %v91 = vpack.c.b16 %v82, %v81
    %v92 = vpack.c.b16 %v84, %v83
    %101 = vmatpush.bf16.msra.mxu0 %v92
    %102 = vmatpush.bf16.msra.mxu0 %v91
    %103 = vmatpush.bf16.msra.mxu0 %v90
    %104 = vmatpush.bf16.msra.mxu0 %v89
    %105 = vmatpush.bf16.msra.mxu0 %v88
    %106 = vmatpush.bf16.msra.mxu0 %v87
    %107 = vmatpush.bf16.msra.mxu0 %v86
    %108 = vmatpush.bf16.msra.mxu0 %v85
    %109 = vmatmul.bf16.gmra.mxu0 %v32
    %v110 = vpop.f32.mrf.mxu0
    %v111 = vadd.f32 %v51, %v110
    %v112 = vpop.f32.mrf.mxu0
    %113 = vdwg.mxu0
    %v114 = vlaneseq
    %v115 = vand.u32 %v114, 127
    %vm116 = vcmp.lt.s32.totalorder %v115, 4
    %v117 = vsel %vm116, %v111, -1e+30
    %118 = vmax.xlane.f32.xlu0 %v117
    %v119 = vpop.xlane.xlu0 %118
    %v120 = vsub.f32 %v117, %v119
    %v121 = vmul.f32 %v120, 1.442695
    %v122 = vpow.pop %v121
    %123 = vadd.xlane.f32.xlu0 %v122
    %v124 = vpop.xlane.xlu0 %123
    %v125 = vlog2.pop %v124
    %v126 = vmul.f32 %v125, 0.6931472
    %v127 = vadd.f32 %v119, %v126
    %v128 = vsub.f32 %v111, %v127
    %130 = vrot.lane.b32.xlu0 %v111, 124
    %v131 = vpop.permute.xlu0 %130
    %vm133 = vcmask 7168
    %134 = vst.msk [vmem:[%s3] sm:$0xff] %vm133, %v131
    %vm135 = vcmask 31744
    %136 = vst.msk [vmem:[%s4] sm:$0xff] %vm135, %v128
    // Predicated region
    $region18: #{pred_forward_fused.1} parent=1 // pred_check
      _
    $region19: #{pred_forward_fused.1} parent=1 // pred_check_branch
      %138 = sbr.rel (0) target = $region21
    $region20: #{pred_forward_fused.1} parent=1 // pred_region
      _
    $region21: #{pred_forward_fused.1} parent=1 // pred_fallthru
      _
    // Predicated region
    $region22: #{pred_forward_fused.1} parent=1 // pred_check
      _
    $region23: #{pred_forward_fused.1} parent=1 // pred_check_branch
      %140 = sbr.rel (0) target = $region25
    $region24: #{pred_forward_fused.1} parent=1 // pred_region
      _
    $region25: #{pred_forward_fused.1} parent=1 // pred_fallthru
      _
    // Predicated region
    $region26: #{pred_forward_fused.1} parent=1 // pred_check
      _
    $region27: #{pred_forward_fused.1} parent=1 // pred_check_branch
      %142 = sbr.rel (0) target = $region29
    $region28: #{pred_forward_fused.1} parent=1 // pred_region
      _
    $region29: #{pred_forward_fused.1} parent=1 // pred_fallthru
      _
    // Predicated region
    $region30: #{pred_forward_fused.1} parent=1 // pred_check
      _
    $region31: #{pred_forward_fused.1} parent=1 // pred_check_branch
      %144 = sbr.rel (0) target = $region33
    $region32: #{pred_forward_fused.1} parent=1 // pred_region
      _
    $region33: #{pred_forward_fused.1} parent=1 // pred_fallthru
      _
    %145 = vsyncpa [#allocation3], 1

</llo_original>
